<compile_context>
chip_gen: v7x
topology: tpu7x:2x2x1
jax: 0.10.0
libtpu: 0.0.40
codegen_flags: <defaults>
</compile_context>

<pallas_src>
import math

import jax
import jax.numpy as jnp
from jax.experimental import pallas as pl
from jax.experimental.pallas import tpu as pltpu

_LANE = 128       # lane width
_SUBLANE = 8      # sublane width: batch-tile granularity
_INV_SQRT2 = 1.0 / math.sqrt(2.0)
_HIDDEN_UNROLL_LIMIT = 6   # beyond this many hidden layers, use fori_loop


def _round_up(x, m):
    return ((x + m - 1) // m) * m


def _cdiv(a, b):
    return -(-a // b)


def _make_mlp_kernel(num_linear, num_pars, out_len, compute_dtype, approximate_gelu):
    """Kernel refs: x (tm, num_pars), w (L, p, p), b (L, 1, p), out (tm, out_len)."""

    def act(v):
        if approximate_gelu:
            # tanh GELU -> EUP slot (co-issues with MXU/VPU work)
            return jax.nn.gelu(v, approximate=True)
        # PyTorch nn.GELU() default: 0.5 * x * (1 + erf(x / sqrt(2)))
        return 0.5 * v * (1.0 + jax.lax.erf(v * _INV_SQRT2))

    def cast(v):
        return v.astype(compute_dtype) if v.dtype != compute_dtype else v

    def kernel(x_ref, w_ref, b_ref, out_ref):
        # --- Layer 0: contract over the TRUE (unpadded) num_pars features. ---
        w0 = w_ref[0][:num_pars, :]                       # (num_pars, p)
        h = jnp.dot(cast(x_ref[...]), w0, preferred_element_type=jnp.float32)
        h = act(h + b_ref[0])                             # (tm, p) f32

        # --- Hidden layers 1 .. num_linear-2 (square p x p matmuls). ---------
        n_hidden = num_linear - 2
        if 0 < n_hidden <= _HIDDEN_UNROLL_LIMIT:
            for l in range(1, num_linear - 1):            # statically unrolled
                h = jnp.dot(cast(h), w_ref[l], preferred_element_type=jnp.float32)
                h = act(h + b_ref[l])
        elif n_hidden > _HIDDEN_UNROLL_LIMIT:
            def body(l, hh):                              # dynamic layer index
                hh = jnp.dot(cast(hh), w_ref[l], preferred_element_type=jnp.float32)
                return act(hh + b_ref[l])
            h = jax.lax.fori_loop(1, num_linear - 1, body, h)

        # --- Final layer: only the out_len columns that are actually stored. -
        last = num_linear - 1
        w_last = w_ref[last][:, :out_len]                 # (p, out_len)
        b_last = b_ref[last][:, :out_len]                 # (1, out_len)
        o = jnp.dot(cast(h), w_last, preferred_element_type=jnp.float32) + b_last
        out_ref[...] = o.astype(out_ref.dtype)

    return kernel


def dynamic_network_forward(x, weights, biases, *, tm=1024,
                            approximate_gelu=False,
                            weight_dtype=jnp.float32):
    """Fused MLP forward.

    x:       (batch, num_pars) f32
    weights: list of (in, out) f32 arrays (pre-transposed vs. PyTorch layout)
    biases:  list of (out,)    f32 arrays
    tm:      target batch-tile size (rows per grid step)
    """
    num_linear = len(weights)
    x = x.astype(jnp.float32)
    batch, num_pars = x.shape
    out_len = weights[-1].shape[1]

    # Uniform padded feature width for the packed weight slab.  128 lanes for
    # small layers; 256-wide panels when layers exceed 128 (v6e/v7x MXU).
    max_feat = max([num_pars, out_len]
                   + [w.shape[0] for w in weights]
                   + [w.shape[1] for w in weights])
    lane_mult = _LANE if max_feat <= _LANE else 2 * _LANE
    p = _round_up(max_feat, lane_mult)

    # Pack all layers into single zero-padded slabs.  Zero padding is exact:
    # padded hidden cols stay 0 through bias (0) and GELU (gelu(0)=0); the
    # first layer contracts only over the real num_pars rows and the last
    # layer only reads the real out_len columns.
    w_packed = jnp.zeros((num_linear, p, p), weight_dtype)
    b_packed = jnp.zeros((num_linear, 1, p), jnp.float32)
    for i, (w, b) in enumerate(zip(weights, biases)):
        w_packed = w_packed.at[i, : w.shape[0], : w.shape[1]].set(
            w.astype(weight_dtype))
        b_packed = b_packed.at[i, 0, : b.shape[0]].set(b.astype(jnp.float32))

    # ---- Batch tiling -------------------------------------------------------
    # Derive tile_m from the batch so padding stays small, and make sure there
    # are >=2 tiles whenever possible so both v7x TensorCores get work.
    batch_8 = _round_up(batch, _SUBLANE)
    tile_target = max(_SUBLANE, min(_round_up(tm, _SUBLANE), batch_8))
    n_tiles = _cdiv(batch_8, tile_target)
    if batch_8 >= 2 * _SUBLANE:
        n_tiles = max(n_tiles, 2)
    tile_m = _round_up(_cdiv(batch_8, n_tiles), _SUBLANE)
    batch_p = tile_m * n_tiles

    if batch_p == batch:
        x_p = x
    else:
        x_p = jnp.zeros((batch_p, num_pars), jnp.float32).at[:batch].set(x)

    # ---- VMEM budget (double-buffered activations + resident weights) ------
    w_itemsize = jnp.dtype(weight_dtype).itemsize
    vmem_need = (2 * (tile_m * num_pars + tile_m * out_len) * 4
                 + 2 * num_linear * (p * p * w_itemsize + p * 4))
    vmem_limit = int(min(max(vmem_need + (8 << 20), 32 << 20), 64 << 20))

    kernel = _make_mlp_kernel(num_linear, num_pars, out_len,
                              weight_dtype, approximate_gelu)

    out_p = pl.pallas_call(
        kernel,
        out_shape=jax.ShapeDtypeStruct((batch_p, out_len), jnp.float32),
        grid_spec=pltpu.PrefetchScalarGridSpec(
            num_scalar_prefetch=0,
            grid=(n_tiles,),
            in_specs=[
                # activations stream per batch tile; last dim is the full,
                # unpadded num_pars (legal: equals the array dim)
                pl.BlockSpec((tile_m, num_pars), lambda i: (i, 0)),
                # weights / biases: constant block index -> resident in VMEM
                pl.BlockSpec((num_linear, p, p), lambda i: (0, 0, 0)),
                pl.BlockSpec((num_linear, 1, p), lambda i: (0, 0, 0)),
            ],
            out_specs=pl.BlockSpec((tile_m, out_len), lambda i: (i, 0)),
        ),
        compiler_params=pltpu.CompilerParams(
            dimension_semantics=("parallel",),   # batch tiles across TCs (v7x)
            vmem_limit_bytes=vmem_limit,
        ),
    )(x_p, w_packed, b_packed)

    # Only batch padding (<~8 rows/tile) remains to slice off.
    return out_p if batch_p == batch else out_p[:batch]


def init_params(key, num_pars, output_len, num_layers, nodes):
    """Deterministic init mimicking PyTorch nn.Linear default U(-1/sqrt(fan_in), +)."""
    dims = [num_pars] + [nodes] * (num_layers + 1) + [output_len]
    weights, biases = [], []
    for i in range(len(dims) - 1):
        fan_in, fan_out = dims[i], dims[i + 1]
        key, kw, kb = jax.random.split(key, 3)
        bound = 1.0 / math.sqrt(fan_in)
        # stored as (in, out)  (PyTorch stores (out, in); we pre-transpose)
        w = jax.random.uniform(kw, (fan_in, fan_out), jnp.float32, -bound, bound)
        b = jax.random.uniform(kb, (fan_out,), jnp.float32, -bound, bound)
        weights.append(w)
        biases.append(b)
    return weights, biases


def reference_forward(x, weights, biases, approximate_gelu=False):
    h = x
    n = len(weights)
    for i, (w, b) in enumerate(zip(weights, biases)):
        h = h @ w + b
        if i < n - 1:
            h = jax.nn.gelu(h, approximate=approximate_gelu)
    return h


if __name__ == "__main__":
    # DynamicNetwork(num_pars=16, output_len=8, num_layers=2, nodes=32)
    num_pars, output_len, num_layers, nodes = 16, 8, 2, 32

    key = jax.random.PRNGKey(0)
    weights, biases = init_params(key, num_pars, output_len, num_layers, nodes)

    # Test 1: tiny batch (single grid step).
    key, kx = jax.random.split(key)
    x_small = jax.random.normal(kx, (8, num_pars), jnp.float32)
    out_small = jax.block_until_ready(dynamic_network_forward(x_small, weights, biases))
    ref_small = reference_forward(x_small, weights, biases)
    assert out_small.shape == (8, output_len)
    assert jnp.allclose(out_small, ref_small, atol=1e-5, rtol=1e-5), "mismatch (batch=8)"

    # Test 2: multi-tile grid with batch padding (exercises the pipeline / 2 TCs).
    key, kx = jax.random.split(key)
    x_big = jax.random.normal(kx, (200, num_pars), jnp.float32)
    out_big = jax.block_until_ready(
        dynamic_network_forward(x_big, weights, biases, tm=64))
    ref_big = reference_forward(x_big, weights, biases)
    assert out_big.shape == (200, output_len)
    assert jnp.allclose(out_big, ref_big, atol=1e-5, rtol=1e-5), "mismatch (batch=200)"

    # Test 3: deep config (num_layers=8) -> exercises the fori_loop hidden path.
    key2 = jax.random.PRNGKey(1)
    w_deep, b_deep = init_params(key2, num_pars, output_len, 8, nodes)
    key2, kx2 = jax.random.split(key2)
    x_deep = jax.random.normal(kx2, (64, num_pars), jnp.float32)
    out_deep = jax.block_until_ready(dynamic_network_forward(x_deep, w_deep, b_deep))
    ref_deep = reference_forward(x_deep, w_deep, b_deep)
    assert out_deep.shape == (64, output_len)
    assert jnp.allclose(out_deep, ref_deep, atol=1e-4, rtol=1e-4), "mismatch (deep)"

    # Test 4: tanh-approximate GELU option (EUP path). Looser tolerance vs the
    # tanh reference; note this intentionally deviates from nn.GELU() default.
    out_appr = jax.block_until_ready(
        dynamic_network_forward(x_big, weights, biases, approximate_gelu=True))
    ref_appr = reference_forward(x_big, weights, biases, approximate_gelu=True)
    assert jnp.allclose(out_appr, ref_appr, atol=1e-3, rtol=1e-3), "mismatch (tanh gelu)"

    print("KERNEL_OK")
</pallas_src>

<mosaic_0001>
module attributes {stable_mosaic.version = 11 : i64} {
  func.func @kernel(%arg0: i32, %arg1: memref<8x16xf32, #tpu.memory_space<vmem>>, %arg2: memref<4x128x128xf32, #tpu.memory_space<vmem>>, %arg3: memref<4x1x128xf32, #tpu.memory_space<vmem>>, %arg4: memref<8x8xf32, #tpu.memory_space<vmem>>) attributes {dimension_semantics = [#tpu.dimension_semantics<parallel>], iteration_bounds = array<i64: 1>, scalar_prefetch = 0 : i64, scratch_operands = 0 : i64, tpu.core_type = #tpu.core_type<tc>, window_params = [{transform_indices = @transform_0, window_bounds = array<i64: 8, 16>}, {pipeline_mode = #tpu.pipeline_mode<synchronous>, transform_indices = @transform_1, window_bounds = array<i64: 4, 128, 128>}, {pipeline_mode = #tpu.pipeline_mode<synchronous>, transform_indices = @transform_2, window_bounds = array<i64: 4, 1, 128>}, {transform_indices = @transform_3, window_bounds = array<i64: 8, 8>}]} {
    %c0 = arith.constant 0 : index
    %c0_0 = arith.constant 0 : index
    %c0_1 = arith.constant 0 : index
    %0 = vector.load %arg2[%c0, %c0_0, %c0_1] : memref<4x128x128xf32, #tpu.memory_space<vmem>>, vector<1x128x128xf32>
    %1 = vector.shape_cast %0 : vector<1x128x128xf32> to vector<128x128xf32>
    %2 = vector.extract_strided_slice %1 {offsets = [0, 0], sizes = [16, 128], strides = [1, 1]} : vector<128x128xf32> to vector<16x128xf32>
    %c0_2 = arith.constant 0 : index
    %c0_3 = arith.constant 0 : index
    %3 = vector.load %arg1[%c0_2, %c0_3] : memref<8x16xf32, #tpu.memory_space<vmem>>, vector<8x16xf32>
    %cst = arith.constant dense<0.000000e+00> : vector<8x128xf32>
    %4 = tpu.matmul %3, %2, %cst {dimension_numbers = #tpu.dot_dimension_numbers<[1], [0], [0], [1], [0, 0, 1, 1], [], []>} : vector<8x16xf32>, vector<16x128xf32>, vector<8x128xf32> -> vector<8x128xf32>
    %c0_4 = arith.constant 0 : index
    %c0_5 = arith.constant 0 : index
    %c0_6 = arith.constant 0 : index
    %5 = vector.load %arg3[%c0_4, %c0_5, %c0_6] : memref<4x1x128xf32, #tpu.memory_space<vmem>>, vector<1x1x128xf32>
    %6 = vector.shape_cast %5 : vector<1x1x128xf32> to vector<1x128xf32>
    %7 = vector.broadcast %6 : vector<1x128xf32> to vector<8x128xf32>
    %8 = arith.addf %4, %7 : vector<8x128xf32>
    %cst_7 = arith.constant 5.000000e-01 : f32
    %9 = vector.broadcast %cst_7 : f32 to vector<8x128xf32>
    %10 = arith.mulf %9, %8 : vector<8x128xf32>
    %cst_8 = arith.constant 0.707106769 : f32
    %11 = vector.broadcast %cst_8 : f32 to vector<8x128xf32>
    %12 = arith.mulf %8, %11 : vector<8x128xf32>
    %13 = math.erf %12 : vector<8x128xf32>
    %cst_9 = arith.constant 1.000000e+00 : f32
    %14 = vector.broadcast %cst_9 : f32 to vector<8x128xf32>
    %15 = arith.addf %14, %13 : vector<8x128xf32>
    %16 = arith.mulf %10, %15 : vector<8x128xf32>
    %c1 = arith.constant 1 : index
    %c0_10 = arith.constant 0 : index
    %c0_11 = arith.constant 0 : index
    %17 = vector.load %arg2[%c1, %c0_10, %c0_11] : memref<4x128x128xf32, #tpu.memory_space<vmem>>, vector<1x128x128xf32>
    %18 = vector.shape_cast %17 : vector<1x128x128xf32> to vector<128x128xf32>
    %cst_12 = arith.constant dense<0.000000e+00> : vector<8x128xf32>
    %19 = tpu.matmul %16, %18, %cst_12 {dimension_numbers = #tpu.dot_dimension_numbers<[1], [0], [0], [1], [0, 0, 1, 1], [], []>} : vector<8x128xf32>, vector<128x128xf32>, vector<8x128xf32> -> vector<8x128xf32>
    %c1_13 = arith.constant 1 : index
    %c0_14 = arith.constant 0 : index
    %c0_15 = arith.constant 0 : index
    %20 = vector.load %arg3[%c1_13, %c0_14, %c0_15] : memref<4x1x128xf32, #tpu.memory_space<vmem>>, vector<1x1x128xf32>
    %21 = vector.shape_cast %20 : vector<1x1x128xf32> to vector<1x128xf32>
    %22 = vector.broadcast %21 : vector<1x128xf32> to vector<8x128xf32>
    %23 = arith.addf %19, %22 : vector<8x128xf32>
    %cst_16 = arith.constant 5.000000e-01 : f32
    %24 = vector.broadcast %cst_16 : f32 to vector<8x128xf32>
    %25 = arith.mulf %24, %23 : vector<8x128xf32>
    %cst_17 = arith.constant 0.707106769 : f32
    %26 = vector.broadcast %cst_17 : f32 to vector<8x128xf32>
    %27 = arith.mulf %23, %26 : vector<8x128xf32>
    %28 = math.erf %27 : vector<8x128xf32>
    %cst_18 = arith.constant 1.000000e+00 : f32
    %29 = vector.broadcast %cst_18 : f32 to vector<8x128xf32>
    %30 = arith.addf %29, %28 : vector<8x128xf32>
    %31 = arith.mulf %25, %30 : vector<8x128xf32>
    %c2 = arith.constant 2 : index
    %c0_19 = arith.constant 0 : index
    %c0_20 = arith.constant 0 : index
    %32 = vector.load %arg2[%c2, %c0_19, %c0_20] : memref<4x128x128xf32, #tpu.memory_space<vmem>>, vector<1x128x128xf32>
    %33 = vector.shape_cast %32 : vector<1x128x128xf32> to vector<128x128xf32>
    %cst_21 = arith.constant dense<0.000000e+00> : vector<8x128xf32>
    %34 = tpu.matmul %31, %33, %cst_21 {dimension_numbers = #tpu.dot_dimension_numbers<[1], [0], [0], [1], [0, 0, 1, 1], [], []>} : vector<8x128xf32>, vector<128x128xf32>, vector<8x128xf32> -> vector<8x128xf32>
    %c2_22 = arith.constant 2 : index
    %c0_23 = arith.constant 0 : index
    %c0_24 = arith.constant 0 : index
    %35 = vector.load %arg3[%c2_22, %c0_23, %c0_24] : memref<4x1x128xf32, #tpu.memory_space<vmem>>, vector<1x1x128xf32>
    %36 = vector.shape_cast %35 : vector<1x1x128xf32> to vector<1x128xf32>
    %37 = vector.broadcast %36 : vector<1x128xf32> to vector<8x128xf32>
    %38 = arith.addf %34, %37 : vector<8x128xf32>
    %cst_25 = arith.constant 5.000000e-01 : f32
    %39 = vector.broadcast %cst_25 : f32 to vector<8x128xf32>
    %40 = arith.mulf %39, %38 : vector<8x128xf32>
    %cst_26 = arith.constant 0.707106769 : f32
    %41 = vector.broadcast %cst_26 : f32 to vector<8x128xf32>
    %42 = arith.mulf %38, %41 : vector<8x128xf32>
    %43 = math.erf %42 : vector<8x128xf32>
    %cst_27 = arith.constant 1.000000e+00 : f32
    %44 = vector.broadcast %cst_27 : f32 to vector<8x128xf32>
    %45 = arith.addf %44, %43 : vector<8x128xf32>
    %46 = arith.mulf %40, %45 : vector<8x128xf32>
    %c3 = arith.constant 3 : index
    %c0_28 = arith.constant 0 : index
    %c0_29 = arith.constant 0 : index
    %47 = vector.load %arg2[%c3, %c0_28, %c0_29] : memref<4x128x128xf32, #tpu.memory_space<vmem>>, vector<1x128x128xf32>
    %48 = vector.shape_cast %47 : vector<1x128x128xf32> to vector<128x128xf32>
    %49 = vector.extract_strided_slice %48 {offsets = [0, 0], sizes = [128, 8], strides = [1, 1]} : vector<128x128xf32> to vector<128x8xf32>
    %c3_30 = arith.constant 3 : index
    %c0_31 = arith.constant 0 : index
    %c0_32 = arith.constant 0 : index
    %50 = vector.load %arg3[%c3_30, %c0_31, %c0_32] : memref<4x1x128xf32, #tpu.memory_space<vmem>>, vector<1x1x128xf32>
    %51 = vector.shape_cast %50 : vector<1x1x128xf32> to vector<1x128xf32>
    %52 = vector.extract_strided_slice %51 {offsets = [0, 0], sizes = [1, 8], strides = [1, 1]} : vector<1x128xf32> to vector<1x8xf32>
    %cst_33 = arith.constant dense<0.000000e+00> : vector<8x8xf32>
    %53 = tpu.matmul %46, %49, %cst_33 {dimension_numbers = #tpu.dot_dimension_numbers<[1], [0], [0], [1], [0, 0, 1, 1], [], []>} : vector<8x128xf32>, vector<128x8xf32>, vector<8x8xf32> -> vector<8x8xf32>
    %54 = vector.broadcast %52 : vector<1x8xf32> to vector<8x8xf32>
    %55 = arith.addf %53, %54 : vector<8x8xf32>
    %c0_34 = arith.constant 0 : index
    %c0_35 = arith.constant 0 : index
    %56 = vector.load %arg4[%c0_34, %c0_35] : memref<8x8xf32, #tpu.memory_space<vmem>>, vector<8x8xf32>
    tpu.vector_store %arg4[%c0_34, %c0_35], %55 {strides = array<i32>} : memref<8x8xf32, #tpu.memory_space<vmem>>, vector<8x8xf32>,
    return
  }
  func.func @transform_0(%arg0: i32) -> (i32, i32) {
    %c0_i32 = arith.constant 0 : i32
    %c0_i32_0 = arith.constant 0 : i32
    return %arg0, %c0_i32 : i32, i32
  }
  func.func @transform_1(%arg0: i32) -> (i32, i32, i32) {
    %c0_i32 = arith.constant 0 : i32
    %c0_i32_0 = arith.constant 0 : i32
    %c0_i32_1 = arith.constant 0 : i32
    %c0_i32_2 = arith.constant 0 : i32
    return %c0_i32, %c0_i32_0, %c0_i32_1 : i32, i32, i32
  }
  func.func @transform_2(%arg0: i32) -> (i32, i32, i32) {
    %c0_i32 = arith.constant 0 : i32
    %c0_i32_0 = arith.constant 0 : i32
    %c0_i32_1 = arith.constant 0 : i32
    %c0_i32_2 = arith.constant 0 : i32
    return %c0_i32, %c0_i32_0, %c0_i32_1 : i32, i32, i32
  }
  func.func @transform_3(%arg0: i32) -> (i32, i32) {
    %c0_i32 = arith.constant 0 : i32
    %c0_i32_0 = arith.constant 0 : i32
    return %arg0, %c0_i32 : i32, i32
  }
}

</mosaic_0001>

<llo_original>
// kernel: tpu_custom_call.1
$region0: #{tpu_custom_call.1}
  #allocation0 [shape = 'u32[]', space=smem, size = 0x4, offset = 0x4, fixed_abs, tag = 'smem constant byte address 0x4 - core index']
  #allocation1 [shape = 'u32[144,128]{1,0:T(1,128)}', space=vmem, size = 0x12000, scoped, tag = 'internal scratch']
  %s0 = inlined_call_operand.hbm [shape: f32[8,16], index: 0, kind: input, shape index: {}]
  %s1 = inlined_call_operand.hbm [shape: f32[4,128,128], index: 1, kind: input, shape index: {}]
  %s2 = inlined_call_operand.vmem [shape: f32[4,1,128], index: 2, kind: input, shape index: {}]
  %s3 = inlined_call_operand.hbm [shape: f32[8,8], index: 3, kind: output, shape index: {}]
  %s4 = sld [smem:[#allocation0]]
  $region30: #{tpu_custom_call.1} parent=0
    _
  %s6 = ssub.s32 1, %s4
  %s7 = scalar_select 0, %s6, %s4
  $region1: #{tpu_custom_call.1} parent=0
    #allocation2 [shape = 'u8[4096]{0}', space=vmem, size = 0x1000, scoped, tag = 'input window, operand 0, single buffered']
    #allocation3 [shape = 's32[1]{0}', space=sflag, size = 0x4, scoped, tag = 'scoped memory for tpu_custom_call.1']
    #allocation4 [shape = 's32[1]{0}', space=sflag, size = 0x4, scoped, tag = 'scoped memory for tpu_custom_call.1']
    #allocation5 [shape = 'u8[262144]{0}', space=vmem, size = 0x40000, scoped, tag = 'input window, operand 1, single buffered']
    #allocation6 [shape = 's32[1]{0}', space=sflag, size = 0x4, scoped, tag = 'scoped memory for tpu_custom_call.1']
    #allocation7 [shape = 'u8[4096]{0}', space=vmem, size = 0x1000, scoped, tag = 'output window, operand 0, single buffered']
    %8 = vsyncpa [#allocation3], 0
    %9 = vsyncpa [#allocation6], 0
    %10 = vsyncpa [#allocation4], 0
    // Predicated region
    $region2: #{tpu_custom_call.1} parent=1 // pred_check
      _
    $region3: #{tpu_custom_call.1} parent=1 // pred_check_branch
      %12 = sbr.rel (0) target = $region5
    $region4: #{tpu_custom_call.1} parent=1 // pred_region
      %s14 = ssub.s32 128, 128
      %15 = vsyncadd [#allocation3], %s14
      %s17 = sshll.u32 [#allocation2], 4
      %s18 = int_to_ptr.vmem [resolvable:$true] %s17
      %20 = dma.hbm_to_vmem [thread:$0]  %s0, 128, %s18, [#allocation3]
    $region5: #{tpu_custom_call.1} parent=1 // pred_fallthru
      _
    // Predicated region
    $region6: #{tpu_custom_call.1} parent=1 // pred_check
      _
    $region7: #{tpu_custom_call.1} parent=1 // pred_check_branch
      %22 = sbr.rel (0) target = $region9
    $region8: #{tpu_custom_call.1} parent=1 // pred_region
      %s24 = ssub.s32 8192, 8192
      %25 = vsyncadd [#allocation6], %s24
      %s26 = sshll.u32 [#allocation5], 4
      %s27 = int_to_ptr.vmem [resolvable:$true] %s26
      %32 = dma.hbm_to_vmem [thread:$0]  %s1, 8192, %s27, [#allocation6], 128, 128, 8
    $region9: #{tpu_custom_call.1} parent=1 // pred_fallthru
      _
    // Predicated region
    $region10: #{tpu_custom_call.1} parent=1 // pred_check
      _
    $region11: #{tpu_custom_call.1} parent=1 // pred_check_branch
      %34 = sbr.rel (0) target = $region13
    $region12: #{tpu_custom_call.1} parent=1 // pred_region
      _
    $region13: #{tpu_custom_call.1} parent=1 // pred_fallthru
      _
    // Predicated region
    $region14: #{tpu_custom_call.1} parent=1 // pred_check
      _
    $region15: #{tpu_custom_call.1} parent=1 // pred_check_branch
      %36 = sbr.rel (0) target = $region17
    $region16: #{tpu_custom_call.1} parent=1 // pred_region
      %37 = dma.done [#allocation3], 128
    $region17: #{tpu_custom_call.1} parent=1 // pred_fallthru
      _
    // Predicated region
    $region18: #{tpu_custom_call.1} parent=1 // pred_check
      _
    $region19: #{tpu_custom_call.1} parent=1 // pred_check_branch
      %39 = sbr.rel (0) target = $region21
    $region20: #{tpu_custom_call.1} parent=1 // pred_region
      %40 = dma.done [#allocation6], 8192
    $region21: #{tpu_custom_call.1} parent=1 // pred_fallthru
      _
    %v41 = vld [vmem:[#allocation5] sm:$0xff]
    %v42 = vld [vmem:[#allocation5 + $0x8] sm:$0xff]
    %v43 = vld [vmem:[#allocation2] sm:$0xff]
    %v44 = vld [vmem:[%s2] sm:$0x1]
    %v46 = vlaneseq
    %v47 = vshrl.u32 %v46, 7
    %v48 = vsub.s32 0, %v47
    %v49 = vrot.slane %v44, %v48
    %vm51 = vcmask 130048
    %v53 = vsel %vm51, %v43, 0
    %55 = vmatprep.subr.mxu0 0.0
    %56 = vmatpush1.msra.mxu0 %v41
    %57 = vmatprep.subr.mxu0 0.0
    %58 = vmatpush1.msra.mxu0 %v42
    %59 = vmatprep.subr.mxu0 0.0
    %60 = vmatpush1.msra.mxu0 0.0
    %61 = vmatprep.subr.mxu0 0.0
    %62 = vmatpush1.msra.mxu0 0.0
    %63 = vmatprep.subr.mxu0 0.0
    %64 = vmatpush1.msra.mxu0 0.0
    %65 = vmatprep.subr.mxu0 0.0
    %66 = vmatpush1.msra.mxu0 0.0
    %67 = vmatprep.subr.mxu0 0.0
    %68 = vmatpush1.msra.mxu0 0.0
    %69 = vmatprep.subr.mxu0 0.0
    %70 = vmatpush1.msra.mxu0 0.0
    %71 = vmatprep.subr.mxu0 0.0
    %72 = vmatpush1.msra.mxu0 0.0
    %73 = vmatprep.subr.mxu0 0.0
    %74 = vmatpush1.msra.mxu0 0.0
    %75 = vmatprep.subr.mxu0 0.0
    %76 = vmatpush1.msra.mxu0 0.0
    %77 = vmatprep.subr.mxu0 0.0
    %78 = vmatpush1.msra.mxu0 0.0
    %79 = vmatprep.subr.mxu0 0.0
    %80 = vmatpush1.msra.mxu0 0.0
    %81 = vmatprep.subr.mxu0 0.0
    %82 = vmatpush1.msra.mxu0 0.0
    %83 = vmatprep.subr.mxu0 0.0
    %84 = vmatpush1.msra.mxu0 0.0
    %85 = vmatprep.subr.mxu0 0.0
    %86 = vmatpush1.msra.mxu0 0.0
    %87 = vmatprep.subr.mxu0 0.0
    %88 = vmatpush1.msra.mxu0 0.0
    %89 = vmatprep.subr.mxu0 0.0
    %90 = vmatpush1.msra.mxu0 0.0
    %91 = vmatprep.subr.mxu0 0.0
    %92 = vmatpush1.msra.mxu0 0.0
    %93 = vmatprep.subr.mxu0 0.0
    %94 = vmatpush1.msra.mxu0 0.0
    %95 = vmatprep.subr.mxu0 0.0
    %96 = vmatpush1.msra.mxu0 0.0
    %97 = vmatprep.subr.mxu0 0.0
    %98 = vmatpush1.msra.mxu0 0.0
    %99 = vmatprep.subr.mxu0 0.0
    %100 = vmatpush1.msra.mxu0 0.0
    %101 = vmatprep.subr.mxu0 0.0
    %102 = vmatpush1.msra.mxu0 0.0
    %103 = vmatprep.subr.mxu0 0.0
    %104 = vmatpush1.msra.mxu0 0.0
    %105 = vmatprep.subr.mxu0 0.0
    %106 = vmatpush1.msra.mxu0 0.0
    %107 = vmatprep.subr.mxu0 0.0
    %108 = vmatpush1.msra.mxu0 0.0
    %109 = vmatprep.subr.mxu0 0.0
    %110 = vmatpush1.msra.mxu0 0.0
    %111 = vmatprep.subr.mxu0 0.0
    %112 = vmatpush1.msra.mxu0 0.0
    %113 = vmatprep.subr.mxu0 0.0
    %114 = vmatpush1.msra.mxu0 0.0
    %115 = vmatprep.subr.mxu0 0.0
    %116 = vmatpush1.msra.mxu0 0.0
    %117 = vmatprep.subr.mxu0 0.0
    %118 = vmatpush1.msra.mxu0 0.0
    %119 = vmatprep.mubr.f32.mxu0 0.0
    %120 = vmatmul.mubr.f32.gmra.mrb[0].mxu0 %v53
    %v121 = vpop.f32.mrb[0].mxu0
    %v122 = vadd.f32 %v49, %v121
    %v123 = vpop.f32.mrb[0].mxu0
    %124 = vdwg.mxu0
    %v125 = vmul.f32 %v122, 0.5
    %v126 = vmul.f32 %v122, 0.70710677
    %v127 = verf.f32.pop %v126
    %v128 = vadd.f32 %v127, 1.0
    %v129 = vmul.f32 %v125, %v128
    %s130 = scalar_lea.vmem [#allocation5], 128
    %v131 = vld [vmem:[%s130] sm:$0xff]
    %v132 = vld [vmem:[%s130 + $0x8] sm:$0xff]
    %v133 = vld [vmem:[%s130 + $0x10] sm:$0xff]
    %v134 = vld [vmem:[%s130 + $0x18] sm:$0xff]
    %v135 = vld [vmem:[%s130 + $0x20] sm:$0xff]
    %v136 = vld [vmem:[%s130 + $0x28] sm:$0xff]
    %v137 = vld [vmem:[%s130 + $0x30] sm:$0xff]
    %v138 = vld [vmem:[%s130 + $0x38] sm:$0xff]
    %v139 = vld [vmem:[%s130 + $0x40] sm:$0xff]
    %v140 = vld [vmem:[%s130 + $0x48] sm:$0xff]
    %v141 = vld [vmem:[%s130 + $0x50] sm:$0xff]
    %v142 = vld [vmem:[%s130 + $0x58] sm:$0xff]
    %v143 = vld [vmem:[%s130 + $0x60] sm:$0xff]
    %v144 = vld [vmem:[%s130 + $0x68] sm:$0xff]
    %v145 = vld [vmem:[%s130 + $0x70] sm:$0xff]
    %v146 = vld [vmem:[%s130 + $0x78] sm:$0xff]
    %s147 = scalar_lea.vmem %s2, 1
    %v148 = vld [vmem:[%s147] sm:$0x1]
    %v150 = vlaneseq
    %v151 = vshrl.u32 %v150, 7
    %v152 = vsub.s32 0, %v151
    %v153 = vrot.slane %v148, %v152
    %155 = vmatprep.subr.mxu0 0.0
    %156 = vmatpush1.msra.mxu0 %v131
    %157 = vmatprep.subr.mxu0 0.0
    %158 = vmatpush1.msra.mxu0 %v132
    %159 = vmatprep.subr.mxu0 0.0
    %160 = vmatpush1.msra.mxu0 %v133
    %161 = vmatprep.subr.mxu0 0.0
    %162 = vmatpush1.msra.mxu0 %v134
    %163 = vmatprep.subr.mxu0 0.0
    %164 = vmatpush1.msra.mxu0 %v135
    %165 = vmatprep.subr.mxu0 0.0
    %166 = vmatpush1.msra.mxu0 %v136
    %167 = vmatprep.subr.mxu0 0.0
    %168 = vmatpush1.msra.mxu0 %v137
    %169 = vmatprep.subr.mxu0 0.0
    %170 = vmatpush1.msra.mxu0 %v138
    %171 = vmatprep.subr.mxu0 0.0
    %172 = vmatpush1.msra.mxu0 %v139
    %173 = vmatprep.subr.mxu0 0.0
    %174 = vmatpush1.msra.mxu0 %v140
    %175 = vmatprep.subr.mxu0 0.0
    %176 = vmatpush1.msra.mxu0 %v141
    %177 = vmatprep.subr.mxu0 0.0
    %178 = vmatpush1.msra.mxu0 %v142
    %179 = vmatprep.subr.mxu0 0.0
    %180 = vmatpush1.msra.mxu0 %v143
    %181 = vmatprep.subr.mxu0 0.0
    %182 = vmatpush1.msra.mxu0 %v144
    %183 = vmatprep.subr.mxu0 0.0
    %184 = vmatpush1.msra.mxu0 %v145
    %185 = vmatprep.subr.mxu0 0.0
    %186 = vmatpush1.msra.mxu0 %v146
    %187 = vmatprep.subr.mxu0 0.0
    %188 = vmatpush1.msra.mxu0 0.0
    %189 = vmatprep.subr.mxu0 0.0
    %190 = vmatpush1.msra.mxu0 0.0
    %191 = vmatprep.subr.mxu0 0.0
    %192 = vmatpush1.msra.mxu0 0.0
    %193 = vmatprep.subr.mxu0 0.0
    %194 = vmatpush1.msra.mxu0 0.0
    %195 = vmatprep.subr.mxu0 0.0
    %196 = vmatpush1.msra.mxu0 0.0
    %197 = vmatprep.subr.mxu0 0.0
    %198 = vmatpush1.msra.mxu0 0.0
    %199 = vmatprep.subr.mxu0 0.0
    %200 = vmatpush1.msra.mxu0 0.0
    %201 = vmatprep.subr.mxu0 0.0
    %202 = vmatpush1.msra.mxu0 0.0
    %203 = vmatprep.subr.mxu0 0.0
    %204 = vmatpush1.msra.mxu0 0.0
    %205 = vmatprep.subr.mxu0 0.0
    %206 = vmatpush1.msra.mxu0 0.0
    %207 = vmatprep.subr.mxu0 0.0
    %208 = vmatpush1.msra.mxu0 0.0
    %209 = vmatprep.subr.mxu0 0.0
    %210 = vmatpush1.msra.mxu0 0.0
    %211 = vmatprep.subr.mxu0 0.0
    %212 = vmatpush1.msra.mxu0 0.0
    %213 = vmatprep.subr.mxu0 0.0
    %214 = vmatpush1.msra.mxu0 0.0
    %215 = vmatprep.subr.mxu0 0.0
    %216 = vmatpush1.msra.mxu0 0.0
    %217 = vmatprep.subr.mxu0 0.0
    %218 = vmatpush1.msra.mxu0 0.0
    %219 = vmatprep.mubr.f32.mxu0 0.0
    %220 = vmatmul.mubr.f32.gmra.mrb[0].mxu0 %v129
    %v221 = vpop.f32.mrb[0].mxu0
    %v222 = vadd.f32 %v153, %v221
    %v223 = vpop.f32.mrb[0].mxu0
    %224 = vdwg.mxu0
    %v225 = vmul.f32 %v222, 0.5
    %v226 = vmul.f32 %v222, 0.70710677
    %v227 = verf.f32.pop %v226
    %v228 = vadd.f32 %v227, 1.0
    %v229 = vmul.f32 %v225, %v228
    %s230 = scalar_lea.vmem [#allocation5], 256
    %v231 = vld [vmem:[%s230] sm:$0xff]
    %v232 = vld [vmem:[%s230 + $0x8] sm:$0xff]
    %v233 = vld [vmem:[%s230 + $0x10] sm:$0xff]
    %v234 = vld [vmem:[%s230 + $0x18] sm:$0xff]
    %v235 = vld [vmem:[%s230 + $0x20] sm:$0xff]
    %v236 = vld [vmem:[%s230 + $0x28] sm:$0xff]
    %v237 = vld [vmem:[%s230 + $0x30] sm:$0xff]
    %v238 = vld [vmem:[%s230 + $0x38] sm:$0xff]
    %v239 = vld [vmem:[%s230 + $0x40] sm:$0xff]
    %v240 = vld [vmem:[%s230 + $0x48] sm:$0xff]
    %v241 = vld [vmem:[%s230 + $0x50] sm:$0xff]
    %v242 = vld [vmem:[%s230 + $0x58] sm:$0xff]
    %v243 = vld [vmem:[%s230 + $0x60] sm:$0xff]
    %v244 = vld [vmem:[%s230 + $0x68] sm:$0xff]
    %v245 = vld [vmem:[%s230 + $0x70] sm:$0xff]
    %v246 = vld [vmem:[%s230 + $0x78] sm:$0xff]
    %s247 = scalar_lea.vmem %s2, 2
    %v248 = vld [vmem:[%s247] sm:$0x1]
    %v250 = vlaneseq
    %v251 = vshrl.u32 %v250, 7
    %v252 = vsub.s32 0, %v251
    %v253 = vrot.slane %v248, %v252
    %255 = vmatprep.subr.mxu0 0.0
    %256 = vmatpush1.msra.mxu0 %v231
    %257 = vmatprep.subr.mxu0 0.0
    %258 = vmatpush1.msra.mxu0 %v232
    %259 = vmatprep.subr.mxu0 0.0
    %260 = vmatpush1.msra.mxu0 %v233
    %261 = vmatprep.subr.mxu0 0.0
    %262 = vmatpush1.msra.mxu0 %v234
    %263 = vmatprep.subr.mxu0 0.0
    %264 = vmatpush1.msra.mxu0 %v235
    %265 = vmatprep.subr.mxu0 0.0
    %266 = vmatpush1.msra.mxu0 %v236
    %267 = vmatprep.subr.mxu0 0.0
    %268 = vmatpush1.msra.mxu0 %v237
    %269 = vmatprep.subr.mxu0 0.0
    %270 = vmatpush1.msra.mxu0 %v238
    %271 = vmatprep.subr.mxu0 0.0
    %272 = vmatpush1.msra.mxu0 %v239
    %273 = vmatprep.subr.mxu0 0.0
    %274 = vmatpush1.msra.mxu0 %v240
    %275 = vmatprep.subr.mxu0 0.0
    %276 = vmatpush1.msra.mxu0 %v241
    %277 = vmatprep.subr.mxu0 0.0
    %278 = vmatpush1.msra.mxu0 %v242
    %279 = vmatprep.subr.mxu0 0.0
    %280 = vmatpush1.msra.mxu0 %v243
    %281 = vmatprep.subr.mxu0 0.0
    %282 = vmatpush1.msra.mxu0 %v244
    %283 = vmatprep.subr.mxu0 0.0
    %284 = vmatpush1.msra.mxu0 %v245
    %285 = vmatprep.subr.mxu0 0.0
    %286 = vmatpush1.msra.mxu0 %v246
    %287 = vmatprep.subr.mxu0 0.0
    %288 = vmatpush1.msra.mxu0 0.0
    %289 = vmatprep.subr.mxu0 0.0
    %290 = vmatpush1.msra.mxu0 0.0
    %291 = vmatprep.subr.mxu0 0.0
    %292 = vmatpush1.msra.mxu0 0.0
    %293 = vmatprep.subr.mxu0 0.0
    %294 = vmatpush1.msra.mxu0 0.0
    %295 = vmatprep.subr.mxu0 0.0
    %296 = vmatpush1.msra.mxu0 0.0
    %297 = vmatprep.subr.mxu0 0.0
    %298 = vmatpush1.msra.mxu0 0.0
    %299 = vmatprep.subr.mxu0 0.0
    %300 = vmatpush1.msra.mxu0 0.0
    %301 = vmatprep.subr.mxu0 0.0
    %302 = vmatpush1.msra.mxu0 0.0
    %303 = vmatprep.subr.mxu0 0.0
    %304 = vmatpush1.msra.mxu0 0.0
    %305 = vmatprep.subr.mxu0 0.0
    %306 = vmatpush1.msra.mxu0 0.0
    %307 = vmatprep.subr.mxu0 0.0
    %308 = vmatpush1.msra.mxu0 0.0
    %309 = vmatprep.subr.mxu0 0.0
    %310 = vmatpush1.msra.mxu0 0.0
    %311 = vmatprep.subr.mxu0 0.0
    %312 = vmatpush1.msra.mxu0 0.0
    %313 = vmatprep.subr.mxu0 0.0
    %314 = vmatpush1.msra.mxu0 0.0
    %315 = vmatprep.subr.mxu0 0.0
    %316 = vmatpush1.msra.mxu0 0.0
    %317 = vmatprep.subr.mxu0 0.0
    %318 = vmatpush1.msra.mxu0 0.0
    %319 = vmatprep.mubr.f32.mxu0 0.0
    %320 = vmatmul.mubr.f32.gmra.mrb[0].mxu0 %v229
    %v321 = vpop.f32.mrb[0].mxu0
    %v322 = vadd.f32 %v253, %v321
    %v323 = vpop.f32.mrb[0].mxu0
    %324 = vdwg.mxu0
    %v325 = vmul.f32 %v322, 0.5
    %v326 = vmul.f32 %v322, 0.70710677
    %v327 = verf.f32.pop %v326
    %v328 = vadd.f32 %v327, 1.0
    %v329 = vmul.f32 %v325, %v328
    %s330 = scalar_lea.vmem [#allocation5], 384
    %v331 = vld [vmem:[%s330] sm:$0xff]
    %v332 = vld [vmem:[%s330 + $0x8] sm:$0xff]
    %v333 = vld [vmem:[%s330 + $0x10] sm:$0xff]
    %v334 = vld [vmem:[%s330 + $0x18] sm:$0xff]
    %v335 = vld [vmem:[%s330 + $0x20] sm:$0xff]
    %v336 = vld [vmem:[%s330 + $0x28] sm:$0xff]
    %v337 = vld [vmem:[%s330 + $0x30] sm:$0xff]
    %v338 = vld [vmem:[%s330 + $0x38] sm:$0xff]
    %v339 = vld [vmem:[%s330 + $0x40] sm:$0xff]
    %v340 = vld [vmem:[%s330 + $0x48] sm:$0xff]
    %v341 = vld [vmem:[%s330 + $0x50] sm:$0xff]
    %v342 = vld [vmem:[%s330 + $0x58] sm:$0xff]
    %v343 = vld [vmem:[%s330 + $0x60] sm:$0xff]
    %v344 = vld [vmem:[%s330 + $0x68] sm:$0xff]
    %v345 = vld [vmem:[%s330 + $0x70] sm:$0xff]
    %v346 = vld [vmem:[%s330 + $0x78] sm:$0xff]
    %s347 = scalar_lea.vmem %s2, 3
    %v348 = vld [vmem:[%s347] sm:$0x1]
    %v350 = vlaneseq
    %v351 = vshrl.u32 %v350, 7
    %v352 = vsub.s32 0, %v351
    %v353 = vrot.slane %v348, %v352
    %355 = vmatprep.subr.mxu0 0.0
    %356 = vmatpush1.msra.mxu0 %v331
    %357 = vmatprep.subr.mxu0 0.0
    %358 = vmatpush1.msra.mxu0 %v332
    %359 = vmatprep.subr.mxu0 0.0
    %360 = vmatpush1.msra.mxu0 %v333
    %361 = vmatprep.subr.mxu0 0.0
    %362 = vmatpush1.msra.mxu0 %v334
    %363 = vmatprep.subr.mxu0 0.0
    %364 = vmatpush1.msra.mxu0 %v335
    %365 = vmatprep.subr.mxu0 0.0
    %366 = vmatpush1.msra.mxu0 %v336
    %367 = vmatprep.subr.mxu0 0.0
    %368 = vmatpush1.msra.mxu0 %v337
    %369 = vmatprep.subr.mxu0 0.0
    %370 = vmatpush1.msra.mxu0 %v338
    %371 = vmatprep.subr.mxu0 0.0
    %372 = vmatpush1.msra.mxu0 %v339
    %373 = vmatprep.subr.mxu0 0.0
    %374 = vmatpush1.msra.mxu0 %v340
    %375 = vmatprep.subr.mxu0 0.0
    %376 = vmatpush1.msra.mxu0 %v341
    %377 = vmatprep.subr.mxu0 0.0
    %378 = vmatpush1.msra.mxu0 %v342
    %379 = vmatprep.subr.mxu0 0.0
    %380 = vmatpush1.msra.mxu0 %v343
    %381 = vmatprep.subr.mxu0 0.0
    %382 = vmatpush1.msra.mxu0 %v344
    %383 = vmatprep.subr.mxu0 0.0
    %384 = vmatpush1.msra.mxu0 %v345
    %385 = vmatprep.subr.mxu0 0.0
    %386 = vmatpush1.msra.mxu0 %v346
    %387 = vmatprep.subr.mxu0 0.0
    %388 = vmatpush1.msra.mxu0 0.0
    %389 = vmatprep.subr.mxu0 0.0
    %390 = vmatpush1.msra.mxu0 0.0
    %391 = vmatprep.subr.mxu0 0.0
    %392 = vmatpush1.msra.mxu0 0.0
    %393 = vmatprep.subr.mxu0 0.0
    %394 = vmatpush1.msra.mxu0 0.0
    %395 = vmatprep.subr.mxu0 0.0
    %396 = vmatpush1.msra.mxu0 0.0
    %397 = vmatprep.subr.mxu0 0.0
    %398 = vmatpush1.msra.mxu0 0.0
    %399 = vmatprep.subr.mxu0 0.0
    %400 = vmatpush1.msra.mxu0 0.0
    %401 = vmatprep.subr.mxu0 0.0
    %402 = vmatpush1.msra.mxu0 0.0
    %403 = vmatprep.subr.mxu0 0.0
    %404 = vmatpush1.msra.mxu0 0.0
    %405 = vmatprep.subr.mxu0 0.0
    %406 = vmatpush1.msra.mxu0 0.0
    %407 = vmatprep.subr.mxu0 0.0
    %408 = vmatpush1.msra.mxu0 0.0
    %409 = vmatprep.subr.mxu0 0.0
    %410 = vmatpush1.msra.mxu0 0.0
    %411 = vmatprep.subr.mxu0 0.0
    %412 = vmatpush1.msra.mxu0 0.0
    %413 = vmatprep.subr.mxu0 0.0
    %414 = vmatpush1.msra.mxu0 0.0
    %415 = vmatprep.subr.mxu0 0.0
    %416 = vmatpush1.msra.mxu0 0.0
    %417 = vmatprep.subr.mxu0 0.0
    %418 = vmatpush1.msra.mxu0 0.0
    %419 = vmatprep.mubr.f32.mxu0 0.0
    %420 = vmatmul.mubr.f32.gmra.mrb[0].mxu0 %v329
    %v421 = vpop.f32.mrb[0].mxu0
    %v422 = vadd.f32 %v353, %v421
    %v423 = vpop.f32.mrb[0].mxu0
    %424 = vdwg.mxu0
    %vm425 = vcmask 64512
    %426 = vst.msk [vmem:[#allocation7] sm:$0xff] %vm425, %v422
    // Predicated region
    $region22: #{tpu_custom_call.1} parent=1 // pred_check
      _
    $region23: #{tpu_custom_call.1} parent=1 // pred_check_branch
      %428 = sbr.rel (0) target = $region25
    $region24: #{tpu_custom_call.1} parent=1 // pred_region
      %s430 = ssub.s32 128, 128
      %431 = vsyncadd [#allocation4], %s430
      %s433 = sshll.u32 [#allocation7], 4
      %s434 = int_to_ptr.vmem [resolvable:$true] %s433
      %436 = dma.vmem_to_hbm [thread:$0]  %s434, 128, %s3, [#allocation4]
    $region25: #{tpu_custom_call.1} parent=1 // pred_fallthru
      _
    // Predicated region
    $region26: #{tpu_custom_call.1} parent=1 // pred_check
      _
    $region27: #{tpu_custom_call.1} parent=1 // pred_check_branch
      %438 = sbr.rel (0) target = $region29
    $region28: #{tpu_custom_call.1} parent=1 // pred_region
      %439 = dma.done [#allocation4], 128
    $region29: #{tpu_custom_call.1} parent=1 // pred_fallthru
      _
    %440 = vsyncpa [#allocation3], 1
    %441 = vsyncpa [#allocation6], 1
    %442 = vsyncpa [#allocation4], 1

</llo_original>
